<compile_context>
chip_gen: v5e
topology: v5e:2x2
jax: 0.10.0
libtpu: 0.0.40
codegen_flags: <defaults>
</compile_context>

<pallas_src>
import functools

import numpy as np
import jax
import jax.numpy as jnp
from jax.experimental import pallas as pl
from jax.experimental.pallas import tpu as pltpu


def _transition_kernel(x_ref, w_ref, b_ref, p_ref, o_ref, *, Nb):
    """One grid step processes Nb images.

    x_ref: (Nb, Cin, H*W)    NCHW images, pixels on the lane axis
    w_ref: (Cout, Cin)       1x1-conv weight with BN scale folded in
    b_ref: (Cout, 1)         folded BN bias = beta - mean * gamma/sqrt(var+eps)  (f32)
    p_ref: (H*W, Ho*Wo)      fused pooling matrix (pair sums x ceil_mode reciprocal, f32)
    o_ref: (Cout, Nb*Ho*Wo)  lane-dense output slab (images side by side on lanes)
    """
    w = w_ref[...]
    b = b_ref[...]
    p = p_ref[...]

    outs = []
    for n in range(Nb):                                   # static unroll, Nb is small
        # 1x1 conv (BN scale folded into weight); f32 accumulation on the MXU.
        y = jnp.dot(w, x_ref[n], preferred_element_type=jnp.float32)      # (Cout, H*W)
        # BN bias + ReLU (VPU, f32).
        y = jnp.maximum(y + b, 0.0)
        # Fused 2x2 ceil_mode average pool: one matmul with the precomputed matrix.
        outs.append(jnp.dot(y, p, preferred_element_type=jnp.float32))    # (Cout, Ho*Wo)

    slab = outs[0] if Nb == 1 else jnp.concatenate(outs, axis=-1)         # (Cout, Nb*Ho*Wo)
    o_ref[...] = slab.astype(o_ref.dtype)                                 # one full-block store


def _fused_pool_matrix(H, W):
    """(H*W, Ho*Wo) matrix for avg_pool2d(kernel=2, stride=2, padding=0, ceil_mode=True).

    Column (a, b) holds 1/count at the (clipped) window positions, so `y @ P` is the
    pooled output including PyTorch's ceil_mode divisor."""
    Ho, Wo = (H + 1) // 2, (W + 1) // 2
    P = np.zeros((H * W, Ho * Wo), np.float32)
    for a in range(Ho):
        for b in range(Wo):
            kh = min(2, H - 2 * a)
            kw = min(2, W - 2 * b)
            inv = 1.0 / (kh * kw)
            for dh in range(kh):
                for dw in range(kw):
                    P[(2 * a + dh) * W + (2 * b + dw), a * Wo + b] = inv
    return P


def _pick_images_per_step(N, HoWo, in_bytes_per_image,
                          vmem_input_budget=8 * 1024 * 1024):
    """Pick Nb | N.  Preference order: lane-dense output slab (Nb*Ho*Wo a multiple of
    128, or the full output width), >= 2 grid steps (both v7x TensorCores busy),
    then the largest Nb (biggest DMA) whose input block fits the VMEM budget."""
    best_nb, best_key = 1, None
    for nb in range(1, N + 1):
        if N % nb:
            continue
        if nb * in_bytes_per_image > vmem_input_budget:
            continue
        lane_dense = (nb * HoWo) % 128 == 0 or nb == N
        key = (lane_dense, N // nb >= 2, nb)
        if best_key is None or key > best_key:
            best_nb, best_key = nb, key
    return best_nb


def transition_forward(x_nchw, conv_w, bn_gamma, bn_beta, bn_mean, bn_var,
                       eps=1e-5, use_dropout=False, use_vision_attention=False,
                       matmul_dtype=None, images_per_step=None):
    """_Transition.forward in eval mode.

    x_nchw: (N, Cin, H, W), conv_w: (Cout, Cin, 1, 1).
    matmul_dtype: optional dtype (e.g. jnp.bfloat16) for the conv matmul operands.
    """
    assert not use_vision_attention  # TODO(synk): CMBABlock path not implemented
    del use_dropout                  # eval-mode dropout is identity

    N, Cin, H, W = x_nchw.shape
    Cout = conv_w.shape[0]
    Ho, Wo = (H + 1) // 2, (W + 1) // 2
    HW, HoWo = H * W, Ho * Wo
    io_dtype = x_nchw.dtype
    mm_dtype = jnp.dtype(matmul_dtype) if matmul_dtype is not None else jnp.dtype(io_dtype)

    # ---- glue: parameter folding (f32 math), NCHW kept (free reshape, no transpose) ----
    scale = bn_gamma.astype(jnp.float32) / jnp.sqrt(bn_var.astype(jnp.float32) + eps)
    w_fold = (conv_w[:, :, 0, 0].astype(jnp.float32) * scale[:, None]).astype(mm_dtype)
    b_fold = (bn_beta.astype(jnp.float32)
              - bn_mean.astype(jnp.float32) * scale).reshape(Cout, 1)       # stays f32
    x_flat = x_nchw.reshape(N, Cin, HW)
    if x_flat.dtype != mm_dtype:
        x_flat = x_flat.astype(mm_dtype)

    pool_mat = jnp.asarray(_fused_pool_matrix(H, W))                         # (HW, HoWo) f32

    # ---- images per grid step ----
    in_bytes_per_image = Cin * HW * mm_dtype.itemsize
    Nb = images_per_step or _pick_images_per_step(N, HoWo, in_bytes_per_image)
    assert N % Nb == 0, (N, Nb)
    steps = N // Nb

    # ---- explicit VMEM budget (v7x: 64 MiB physical, 32 MiB default scoped limit) ----
    in_blk = Nb * Cin * HW * mm_dtype.itemsize
    out_blk = Cout * Nb * HoWo * jnp.dtype(io_dtype).itemsize
    const_blk = Cout * Cin * mm_dtype.itemsize + Cout * 4 + HW * HoWo * 4
    interm = Nb * (Cout * HW + Cout * HoWo) * 4
    vmem_bytes = int(min(64 << 20,
                         max(16 << 20,
                             2 * (in_blk + out_blk + const_blk) + interm + (2 << 20))))

    kernel = functools.partial(_transition_kernel, Nb=Nb)

    out = pl.pallas_call(
        kernel,
        out_shape=jax.ShapeDtypeStruct((Cout, N * HoWo), io_dtype),
        grid_spec=pltpu.PrefetchScalarGridSpec(
            num_scalar_prefetch=0,
            grid=(steps,),
            in_specs=[
                pl.BlockSpec((Nb, Cin, HW), lambda g: (g, 0, 0)),   # Nb images
                pl.BlockSpec((Cout, Cin), lambda g: (0, 0)),        # folded weight
                pl.BlockSpec((Cout, 1), lambda g: (0, 0)),          # folded bias (f32)
                pl.BlockSpec((HW, HoWo), lambda g: (0, 0)),         # fused pool matrix (f32)
            ],
            out_specs=pl.BlockSpec((Cout, Nb * HoWo), lambda g: (0, g)),
        ),
        compiler_params=pltpu.CompilerParams(
            dimension_semantics=("parallel",),
            vmem_limit_bytes=vmem_bytes),
    )(x_flat, w_fold, b_fold, pool_mat)

    # Layout plumbing back to NCHW: (Cout, N*Ho*Wo) -> (N, Cout, Ho, Wo).
    return out.reshape(Cout, N, Ho, Wo).transpose(1, 0, 2, 3)


def _reference(x, conv_w, gamma, beta, mean, var, eps=1e-5):
    """Pure-JAX reference of the PyTorch forward (eval mode), any H/W (ceil_mode=True)."""
    y = jnp.einsum('nchw,oc->nohw', x, conv_w[:, :, 0, 0])
    s = gamma / jnp.sqrt(var + eps)
    y = y * s[None, :, None, None] + (beta - mean * s)[None, :, None, None]
    y = jnp.maximum(y, 0.0)
    N, Co, H, W = y.shape
    Ho, Wo = (H + 1) // 2, (W + 1) // 2
    rows = []
    for a in range(Ho):
        cols = []
        for b in range(Wo):
            win = y[:, :, 2 * a:2 * a + 2, 2 * b:2 * b + 2]   # clips at the edges
            cols.append(win.mean(axis=(2, 3)))                 # ceil_mode divisor = count
        rows.append(jnp.stack(cols, axis=-1))
    return jnp.stack(rows, axis=-2)


if __name__ == "__main__":
    N, Cin, Cout, H, W = 4, 16, 8, 16, 16   # n_channels=16, n_out_channels=8

    key = jax.random.PRNGKey(0)
    kx, kw, kg, kb, km, kv = jax.random.split(key, 6)
    x = jax.random.normal(kx, (N, Cin, H, W), jnp.float32)
    conv_w = jax.random.normal(kw, (Cout, Cin, 1, 1), jnp.float32) * 0.1
    bn_gamma = 1.0 + 0.1 * jax.random.normal(kg, (Cout,), jnp.float32)
    bn_beta = 0.1 * jax.random.normal(kb, (Cout,), jnp.float32)
    bn_mean = 0.1 * jax.random.normal(km, (Cout,), jnp.float32)
    bn_var = jax.random.uniform(kv, (Cout,), jnp.float32, minval=0.5, maxval=1.5)

    # Even H/W (main path).
    out = transition_forward(x, conv_w, bn_gamma, bn_beta, bn_mean, bn_var,
                             use_dropout=True, use_vision_attention=False)
    out = jax.block_until_ready(out)
    ref = jax.block_until_ready(_reference(x, conv_w, bn_gamma, bn_beta, bn_mean, bn_var))
    np.testing.assert_allclose(np.asarray(out), np.asarray(ref), rtol=1e-5, atol=1e-5)
    assert out.shape == (N, Cout, (H + 1) // 2, (W + 1) // 2)

    # Odd H/W: exercises the ceil_mode clipped-window divisors.
    H2, W2 = 15, 11
    x2 = jax.random.normal(kx, (N, Cin, H2, W2), jnp.float32)
    out2 = jax.block_until_ready(
        transition_forward(x2, conv_w, bn_gamma, bn_beta, bn_mean, bn_var))
    ref2 = jax.block_until_ready(_reference(x2, conv_w, bn_gamma, bn_beta, bn_mean, bn_var))
    np.testing.assert_allclose(np.asarray(out2), np.asarray(ref2), rtol=1e-5, atol=1e-5)
    assert out2.shape == (N, Cout, (H2 + 1) // 2, (W2 + 1) // 2)

    # bf16 conv operands (MXU-native on v5e/v6e/v7x); looser tolerance vs the f32 reference.
    out3 = jax.block_until_ready(
        transition_forward(x, conv_w, bn_gamma, bn_beta, bn_mean, bn_var,
                           matmul_dtype=jnp.bfloat16))
    np.testing.assert_allclose(np.asarray(out3), np.asarray(ref), rtol=2e-2, atol=2e-2)

    print("KERNEL_OK")
</pallas_src>

<mosaic_0001>
module attributes {stable_mosaic.version = 11 : i64} {
  func.func @_transition_kernel(%arg0: i32, %arg1: memref<2x16x256xf32, #tpu.memory_space<vmem>>, %arg2: memref<8x16xf32, #tpu.memory_space<vmem>>, %arg3: memref<8x1xf32, #tpu.memory_space<vmem>>, %arg4: memref<256x64xf32, #tpu.memory_space<vmem>>, %arg5: memref<8x128xf32, #tpu.memory_space<vmem>>) attributes {dimension_semantics = [#tpu.dimension_semantics<parallel>], iteration_bounds = array<i64: 2>, scalar_prefetch = 0 : i64, scratch_operands = 0 : i64, tpu.core_type = #tpu.core_type<tc>, window_params = [{transform_indices = @transform_0, window_bounds = array<i64: 2, 16, 256>}, {pipeline_mode = #tpu.pipeline_mode<synchronous>, transform_indices = @transform_1, window_bounds = array<i64: 8, 16>}, {pipeline_mode = #tpu.pipeline_mode<synchronous>, transform_indices = @transform_2, window_bounds = array<i64: 8, 1>}, {pipeline_mode = #tpu.pipeline_mode<synchronous>, transform_indices = @transform_3, window_bounds = array<i64: 256, 64>}, {transform_indices = @transform_4, window_bounds = array<i64: 8, 128>}]} {
    %c0 = arith.constant 0 : index
    %c0_0 = arith.constant 0 : index
    %0 = vector.load %arg2[%c0, %c0_0] : memref<8x16xf32, #tpu.memory_space<vmem>>, vector<8x16xf32>
    %c0_1 = arith.constant 0 : index
    %c0_2 = arith.constant 0 : index
    %1 = vector.load %arg3[%c0_1, %c0_2] : memref<8x1xf32, #tpu.memory_space<vmem>>, vector<8x1xf32>
    %c0_3 = arith.constant 0 : index
    %c0_4 = arith.constant 0 : index
    %2 = vector.load %arg4[%c0_3, %c0_4] : memref<256x64xf32, #tpu.memory_space<vmem>>, vector<256x64xf32>
    %c0_5 = arith.constant 0 : index
    %c0_6 = arith.constant 0 : index
    %c0_7 = arith.constant 0 : index
    %3 = vector.load %arg1[%c0_5, %c0_6, %c0_7] : memref<2x16x256xf32, #tpu.memory_space<vmem>>, vector<1x16x256xf32>
    %4 = vector.shape_cast %3 : vector<1x16x256xf32> to vector<16x256xf32>
    %cst = arith.constant dense<0.000000e+00> : vector<8x256xf32>
    %5 = tpu.matmul %0, %4, %cst {dimension_numbers = #tpu.dot_dimension_numbers<[1], [0], [0], [1], [0, 0, 1, 1], [], []>} : vector<8x16xf32>, vector<16x256xf32>, vector<8x256xf32> -> vector<8x256xf32>
    %6 = vector.broadcast %1 : vector<8x1xf32> to vector<8x256xf32>
    %7 = arith.addf %5, %6 : vector<8x256xf32>
    %cst_8 = arith.constant 0.000000e+00 : f32
    %8 = vector.broadcast %cst_8 : f32 to vector<8x256xf32>
    %9 = arith.maximumf %7, %8 : vector<8x256xf32>
    %cst_9 = arith.constant dense<0.000000e+00> : vector<8x64xf32>
    %10 = tpu.matmul %9, %2, %cst_9 {dimension_numbers = #tpu.dot_dimension_numbers<[1], [0], [0], [1], [0, 0, 1, 1], [], []>} : vector<8x256xf32>, vector<256x64xf32>, vector<8x64xf32> -> vector<8x64xf32>
    %c1 = arith.constant 1 : index
    %c0_10 = arith.constant 0 : index
    %c0_11 = arith.constant 0 : index
    %11 = vector.load %arg1[%c1, %c0_10, %c0_11] : memref<2x16x256xf32, #tpu.memory_space<vmem>>, vector<1x16x256xf32>
    %12 = vector.shape_cast %11 : vector<1x16x256xf32> to vector<16x256xf32>
    %cst_12 = arith.constant dense<0.000000e+00> : vector<8x256xf32>
    %13 = tpu.matmul %0, %12, %cst_12 {dimension_numbers = #tpu.dot_dimension_numbers<[1], [0], [0], [1], [0, 0, 1, 1], [], []>} : vector<8x16xf32>, vector<16x256xf32>, vector<8x256xf32> -> vector<8x256xf32>
    %14 = vector.broadcast %1 : vector<8x1xf32> to vector<8x256xf32>
    %15 = arith.addf %13, %14 : vector<8x256xf32>
    %cst_13 = arith.constant 0.000000e+00 : f32
    %16 = vector.broadcast %cst_13 : f32 to vector<8x256xf32>
    %17 = arith.maximumf %15, %16 : vector<8x256xf32>
    %cst_14 = arith.constant dense<0.000000e+00> : vector<8x64xf32>
    %18 = tpu.matmul %17, %2, %cst_14 {dimension_numbers = #tpu.dot_dimension_numbers<[1], [0], [0], [1], [0, 0, 1, 1], [], []>} : vector<8x256xf32>, vector<256x64xf32>, vector<8x64xf32> -> vector<8x64xf32>
    %19 = tpu.concatenate %10, %18 in 1 : vector<8x64xf32>, vector<8x64xf32> -> vector<8x128xf32>
    %c0_15 = arith.constant 0 : index
    %c0_16 = arith.constant 0 : index
    %20 = vector.load %arg5[%c0_15, %c0_16] : memref<8x128xf32, #tpu.memory_space<vmem>>, vector<8x128xf32>
    tpu.vector_store %arg5[%c0_15, %c0_16], %19 {strides = array<i32>} : memref<8x128xf32, #tpu.memory_space<vmem>>, vector<8x128xf32>,
    return
  }
  func.func @transform_0(%arg0: i32) -> (i32, i32, i32) {
    %c0_i32 = arith.constant 0 : i32
    %c0_i32_0 = arith.constant 0 : i32
    %c0_i32_1 = arith.constant 0 : i32
    return %arg0, %c0_i32, %c0_i32_0 : i32, i32, i32
  }
  func.func @transform_1(%arg0: i32) -> (i32, i32) {
    %c0_i32 = arith.constant 0 : i32
    %c0_i32_0 = arith.constant 0 : i32
    %c0_i32_1 = arith.constant 0 : i32
    return %c0_i32, %c0_i32_0 : i32, i32
  }
  func.func @transform_2(%arg0: i32) -> (i32, i32) {
    %c0_i32 = arith.constant 0 : i32
    %c0_i32_0 = arith.constant 0 : i32
    %c0_i32_1 = arith.constant 0 : i32
    return %c0_i32, %c0_i32_0 : i32, i32
  }
  func.func @transform_3(%arg0: i32) -> (i32, i32) {
    %c0_i32 = arith.constant 0 : i32
    %c0_i32_0 = arith.constant 0 : i32
    %c0_i32_1 = arith.constant 0 : i32
    return %c0_i32, %c0_i32_0 : i32, i32
  }
  func.func @transform_4(%arg0: i32) -> (i32, i32) {
    %c0_i32 = arith.constant 0 : i32
    %c0_i32_0 = arith.constant 0 : i32
    return %c0_i32, %arg0 : i32, i32
  }
}

</mosaic_0001>

<llo_original>
// kernel: tpu_custom_call.1
$region0: #{tpu_custom_call.1}
  #allocation0 [shape = 'u32[]', space=smem, size = 0x4, offset = 0x4, fixed_abs, tag = 'smem constant byte address 0x4 - core index']
  #allocation1 [shape = 'u32[72,128]{1,0:T(1,128)}', space=vmem, size = 0x9000, scoped, tag = 'internal scratch']
  %s0 = inlined_call_operand.vmem [shape: f32[4,16,256], index: 0, kind: input, shape index: {}]
  %s1 = inlined_call_operand.vmem [shape: f32[8,16], index: 1, kind: input, shape index: {}]
  %s2 = inlined_call_operand.vmem [shape: f32[8,1], index: 2, kind: input, shape index: {}]
  %s3 = inlined_call_operand.vmem [shape: f32[256,64], index: 3, kind: input, shape index: {}]
  %s4 = inlined_call_operand.hbm [shape: f32[8,256], index: 4, kind: output, shape index: {}]
  %s5 = sld [smem:[#allocation0]]
  $region49: #{tpu_custom_call.1} parent=0
    _
  %s7 = ssub.s32 1, %s5
  %s8 = scalar_select 0, %s7, %s5
  $region1: #{tpu_custom_call.1} parent=0
    #allocation2 [shape = 'u8[8192]{0}', space=vmem, size = 0x2000, scoped, tag = 'output window, operand 0']
    #allocation3 [shape = 's32[2]{0}', space=sflag, size = 0x8, scoped, tag = 'scoped memory for tpu_custom_call.1']
    %9 = vsyncpa [#allocation3], 0
    %s10 = scalar_lea.sflag [#allocation3], 1
    %11 = vsyncpa %s10, 0
    loop: start=0, step=1, limit=4
    $region2: #{tpu_custom_call.1} parent=1 // loop_pre_header
      _
    $region3: #{tpu_custom_call.1} parent=1 // loop_header
      %s13 = sphi 0, %s17
      %p14 = scmp.ge.s32.totalorder %s13, 4
      %s23 = sphi 0, %s25
      %s26 = sphi 0, %s23
      %s27 = sphi 0, %s26
      %s43 = sphi 0, %s27
      %s47 = sphi 0, %s47
      %s49 = sphi 0, %s47
      %s50 = sphi 0, %s49
      %s64 = sphi 0, %s50
      %s68 = sphi 0, %s68
      %s70 = sphi 0, %s68
      %s71 = sphi 0, %s70
      %s85 = sphi 0, %s71
      %s89 = sphi 0, %s89
      %s91 = sphi 0, %s89
      %s92 = sphi 0, %s91
      %s106 = sphi 0, %s92
      %s112 = sphi 0, %s114
      %s115 = sphi 0, %s112
      %s116 = sphi 0, %s115
      %s132 = sphi 0, %s116
    $region4: #{tpu_custom_call.1} parent=1 // loop_header_branch
      %16 = sbr.rel (%p14) target = $region8
    $region5: #{tpu_custom_call.1} parent=1 // loop_body
      %s18 = ssub.s32 %s13, 1
      %s19 = ssub.s32 %s13, 2
      %s20 = sadd.s32 %s13, 1
      %s21 = ssub.s32 %s13, %s20
      %p22 = scmp.eq.s32.totalorder %s21, 0
      %s24 = sadd.s32 %s23, 1
      %s25 = scalar_select %p22, %s23, %s24
      %p28 = pneg %p22
      %p29 = scmp.eq.s32.totalorder %s13, 1
      %p30 = por %p28, %p29
      %p31 = scmp.ne.s32.totalorder %s23, %s26
      %p32 = scmp.eq.s32.totalorder %s13, 0
      %p33 = por %p31, %p32
      %p34 = scmp.ne.s32.totalorder %s23, %s26
      %p35 = scmp.eq.s32.totalorder %s18, 1
      %p36 = por %p34, %p35
      %p37 = scmp.ne.s32.totalorder %s26, %s27
      %p38 = scmp.eq.s32.totalorder %s18, 0
      %p39 = por %p37, %p38
      %p40 = scmp.ne.s32.totalorder %s26, %s27
      %p41 = scmp.eq.s32.totalorder %s19, 1
      %p42 = por %p40, %p41
      %p44 = scmp.ne.s32.totalorder %s27, %s43
      %p45 = scmp.eq.s32.totalorder %s19, 0
      %p46 = por %p44, %p45
      %s48 = sadd.s32 %s47, 1
      %p51 = scmp.eq.s32.totalorder %s13, 1
      %p52 = scmp.ne.s32.totalorder %s47, %s49
      %p53 = scmp.eq.s32.totalorder %s13, 0
      %p54 = por %p52, %p53
      %p55 = scmp.ne.s32.totalorder %s47, %s49
      %p56 = scmp.eq.s32.totalorder %s18, 1
      %p57 = por %p55, %p56
      %p58 = scmp.ne.s32.totalorder %s49, %s50
      %p59 = scmp.eq.s32.totalorder %s18, 0
      %p60 = por %p58, %p59
      %p61 = scmp.ne.s32.totalorder %s49, %s50
      %p62 = scmp.eq.s32.totalorder %s19, 1
      %p63 = por %p61, %p62
      %p65 = scmp.ne.s32.totalorder %s50, %s64
      %p66 = scmp.eq.s32.totalorder %s19, 0
      %p67 = por %p65, %p66
      %s69 = sadd.s32 %s68, 1
      %p72 = scmp.eq.s32.totalorder %s13, 1
      %p73 = scmp.ne.s32.totalorder %s68, %s70
      %p74 = scmp.eq.s32.totalorder %s13, 0
      %p75 = por %p73, %p74
      %p76 = scmp.ne.s32.totalorder %s68, %s70
      %p77 = scmp.eq.s32.totalorder %s18, 1
      %p78 = por %p76, %p77
      %p79 = scmp.ne.s32.totalorder %s70, %s71
      %p80 = scmp.eq.s32.totalorder %s18, 0
      %p81 = por %p79, %p80
      %p82 = scmp.ne.s32.totalorder %s70, %s71
      %p83 = scmp.eq.s32.totalorder %s19, 1
      %p84 = por %p82, %p83
      %p86 = scmp.ne.s32.totalorder %s71, %s85
      %p87 = scmp.eq.s32.totalorder %s19, 0
      %p88 = por %p86, %p87
      %s90 = sadd.s32 %s89, 1
      %p93 = scmp.eq.s32.totalorder %s13, 1
      %p94 = scmp.ne.s32.totalorder %s89, %s91
      %p95 = scmp.eq.s32.totalorder %s13, 0
      %p96 = por %p94, %p95
      %p97 = scmp.ne.s32.totalorder %s89, %s91
      %p98 = scmp.eq.s32.totalorder %s18, 1
      %p99 = por %p97, %p98
      %p100 = scmp.ne.s32.totalorder %s91, %s92
      %p101 = scmp.eq.s32.totalorder %s18, 0
      %p102 = por %p100, %p101
      %p103 = scmp.ne.s32.totalorder %s91, %s92
      %p104 = scmp.eq.s32.totalorder %s19, 1
      %p105 = por %p103, %p104
      %p107 = scmp.ne.s32.totalorder %s92, %s106
      %p108 = scmp.eq.s32.totalorder %s19, 0
      %p109 = por %p107, %p108
      %s110 = ssub.s32 %s13, %s20
      %p111 = scmp.eq.s32.totalorder %s110, 0
      %s113 = sadd.s32 %s112, 1
      %s114 = scalar_select %p111, %s112, %s113
      %p117 = pneg %p111
      %p118 = scmp.eq.s32.totalorder %s13, 1
      %p119 = por %p117, %p118
      %p120 = scmp.ne.s32.totalorder %s112, %s115
      %p121 = scmp.eq.s32.totalorder %s13, 0
      %p122 = por %p120, %p121
      %p123 = scmp.ne.s32.totalorder %s112, %s115
      %p124 = scmp.eq.s32.totalorder %s18, 1
      %p125 = por %p123, %p124
      %p126 = scmp.ne.s32.totalorder %s115, %s116
      %p127 = scmp.eq.s32.totalorder %s18, 0
      %p128 = por %p126, %p127
      %p129 = scmp.ne.s32.totalorder %s115, %s116
      %p130 = scmp.eq.s32.totalorder %s19, 1
      %p131 = por %p129, %p130
      %p133 = scmp.ne.s32.totalorder %s116, %s132
      %p134 = scmp.eq.s32.totalorder %s19, 0
      %p135 = por %p133, %p134
      %p136 = scmp.le.s32.totalorder 1, %s13
      %p137 = scmp.lt.s32.totalorder %s13, 3
      %p138 = pnand %p136, %p137
      %p139 = pneg %p138
      // Predicated region
      $region9: #{tpu_custom_call.1} parent=5 // pred_check
        _
      $region10: #{tpu_custom_call.1} parent=5 // pred_check_branch
        %141 = sbr.rel (%p138) target = $region12
      $region11: #{tpu_custom_call.1} parent=5 // pred_region
        %s142 = ssub.s32 %s13, 1
        // Predicated region
        $region13: #{tpu_custom_call.1} parent=11 // pred_check
          %p143 = pneg %p60
        $region14: #{tpu_custom_call.1} parent=11 // pred_check_branch
          %145 = sbr.rel (%p143) target = $region16
        $region15: #{tpu_custom_call.1} parent=11 // pred_region
          _
        $region16: #{tpu_custom_call.1} parent=11 // pred_fallthru
          _
        // Predicated region
        $region17: #{tpu_custom_call.1} parent=11 // pred_check
          %p146 = pneg %p81
        $region18: #{tpu_custom_call.1} parent=11 // pred_check_branch
          %148 = sbr.rel (%p146) target = $region20
        $region19: #{tpu_custom_call.1} parent=11 // pred_region
          _
        $region20: #{tpu_custom_call.1} parent=11 // pred_fallthru
          _
        // Predicated region
        $region21: #{tpu_custom_call.1} parent=11 // pred_check
          %p149 = pneg %p102
        $region22: #{tpu_custom_call.1} parent=11 // pred_check_branch
          %151 = sbr.rel (%p149) target = $region24
        $region23: #{tpu_custom_call.1} parent=11 // pred_region
          _
        $region24: #{tpu_custom_call.1} parent=11 // pred_fallthru
          _
      $region12: #{tpu_custom_call.1} parent=5 // pred_fallthru
        _
      %p152 = scmp.lt.s32.totalorder %s13, 2
      // Predicated region
      $region25: #{tpu_custom_call.1} parent=5 // pred_check
        %p153 = pneg %p152
      $region26: #{tpu_custom_call.1} parent=5 // pred_check_branch
        %155 = sbr.rel (%p153) target = $region28
      $region27: #{tpu_custom_call.1} parent=5 // pred_region
        // Predicated region
        $region29: #{tpu_custom_call.1} parent=27 // pred_check
          %p156 = pneg %p33
        $region30: #{tpu_custom_call.1} parent=27 // pred_check_branch
          %158 = sbr.rel (%p156) target = $region32
        $region31: #{tpu_custom_call.1} parent=27 // pred_region
          %s159 = smul.u32 2, %s13
          %p160 = scmp.lt.s32.totalorder %s159, 3
          %s161 = scalar_select %p160, %s159, 3
          %s162 = smul.addr %s161, 4
          %s163 = smul.addr %s162, 8
          %s164 = scalar_lea.vmem %s0, %s163
          %s165 = smul.u32 2, %s13
        $region32: #{tpu_custom_call.1} parent=27 // pred_fallthru
          _
      $region28: #{tpu_custom_call.1} parent=5 // pred_fallthru
        _
      %p166 = scmp.le.s32.totalorder 1, %s13
      %p167 = scmp.lt.s32.totalorder %s13, 3
      %p168 = pnand %p166, %p167
      %p169 = pneg %p168
      // Predicated region
      $region33: #{tpu_custom_call.1} parent=5 // pred_check
        _
      $region34: #{tpu_custom_call.1} parent=5 // pred_check_branch
        %171 = sbr.rel (%p168) target = $region36
      $region35: #{tpu_custom_call.1} parent=5 // pred_region
        %s172 = ssub.s32 %s13, 1
        %s173 = smul.u32 2, %s18
        %p174 = scmp.lt.s32.totalorder %s173, 3
        %s175 = scalar_select %p174, %s173, 3
        %s176 = smul.addr %s175, 4
        %s177 = smul.addr %s176, 8
        %s178 = scalar_lea.vmem %s0, %s177
        %p179 = pneg %p39
        %p180 = pneg %p36
        %p181 = pneg %p60
        %p182 = pneg %p57
        %p183 = pneg %p81
        %p184 = pneg %p78
        %p185 = pneg %p102
        %p186 = pneg %p99
        %p187 = pneg %p128
        %p188 = pneg %p125
        %s189 = sand.u32 %s115, 1
        %s190 = scalar_lea.sflag [#allocation3], %s189
        %s191 = sand.u32 %s115, 1
        %s192 = smul.addr %s191, 8
        %s193 = scalar_lea.vmem [#allocation2], %s192
        %s194 = smul.u32 2, %s18
        %p195 = scmp.lt.s32.totalorder %s194, 3
        %s196 = scalar_select %p195, %s194, 3
        %s197 = smul.addr %s196, 4
        %s198 = smul.addr %s197, 8
        %s199 = scalar_lea.vmem %s0, %s198
        %s200 = smul.u32 2, %s18
        %v201 = vld [vmem:[%s1] sm:$0xff]
        %v202 = vld [vmem:[%s2] sm:$0xff]
        %v203 = vld [vmem:[%s3] sm:$0xff]
        %v204 = vld [vmem:[%s3 + $0x8] sm:$0xff]
        %v205 = vld [vmem:[%s3 + $0x10] sm:$0xff]
        %v206 = vld [vmem:[%s3 + $0x18] sm:$0xff]
        %v207 = vld [vmem:[%s3 + $0x20] sm:$0xff]
        %v208 = vld [vmem:[%s3 + $0x28] sm:$0xff]
        %v209 = vld [vmem:[%s3 + $0x30] sm:$0xff]
        %v210 = vld [vmem:[%s3 + $0x38] sm:$0xff]
        %v211 = vld [vmem:[%s3 + $0x40] sm:$0xff]
        %v212 = vld [vmem:[%s3 + $0x48] sm:$0xff]
        %v213 = vld [vmem:[%s3 + $0x50] sm:$0xff]
        %v214 = vld [vmem:[%s3 + $0x58] sm:$0xff]
        %v215 = vld [vmem:[%s3 + $0x60] sm:$0xff]
        %v216 = vld [vmem:[%s3 + $0x68] sm:$0xff]
        %v217 = vld [vmem:[%s3 + $0x70] sm:$0xff]
        %v218 = vld [vmem:[%s3 + $0x78] sm:$0xff]
        %v219 = vld [vmem:[%s3 + $0x80] sm:$0xff]
        %v220 = vld [vmem:[%s3 + $0x88] sm:$0xff]
        %v221 = vld [vmem:[%s3 + $0x90] sm:$0xff]
        %v222 = vld [vmem:[%s3 + $0x98] sm:$0xff]
        %v223 = vld [vmem:[%s3 + $0xa0] sm:$0xff]
        %v224 = vld [vmem:[%s3 + $0xa8] sm:$0xff]
        %v225 = vld [vmem:[%s3 + $0xb0] sm:$0xff]
        %v226 = vld [vmem:[%s3 + $0xb8] sm:$0xff]
        %v227 = vld [vmem:[%s3 + $0xc0] sm:$0xff]
        %v228 = vld [vmem:[%s3 + $0xc8] sm:$0xff]
        %v229 = vld [vmem:[%s3 + $0xd0] sm:$0xff]
        %v230 = vld [vmem:[%s3 + $0xd8] sm:$0xff]
        %v231 = vld [vmem:[%s3 + $0xe0] sm:$0xff]
        %v232 = vld [vmem:[%s3 + $0xe8] sm:$0xff]
        %v233 = vld [vmem:[%s3 + $0xf0] sm:$0xff]
        %v234 = vld [vmem:[%s3 + $0xf8] sm:$0xff]
        %v235 = vld [vmem:[%s199] sm:$0xff]
        %v236 = vld [vmem:[%s199 + $0x8] sm:$0xff]
        %v237 = vld [vmem:[%s199 + $0x10] sm:$0xff]
        %v238 = vld [vmem:[%s199 + $0x18] sm:$0xff]
        %240 = vset.pattern.permute.xlu0 0
        %241 = vperm.xlu0 %240, %v202
        %v242 = vpop.permute.xlu0 %241
        %vm244 = vcmask 130048
        %v246 = vsel %vm244, %v201, 0
        %248 = vmatpush.msra.mxu0 0.0
        %249 = vmatpush.msra.mxu0 0.0
        %250 = vmatpush.msra.mxu0 0.0
        %251 = vmatpush.msra.mxu0 0.0
        %252 = vmatpush.msra.mxu0 0.0
        %253 = vmatpush.msra.mxu0 0.0
        %254 = vmatpush.msra.mxu0 0.0
        %255 = vmatpush.msra.mxu0 0.0
        %256 = vmatpush.msra.mxu0 0.0
        %257 = vmatpush.msra.mxu0 0.0
        %258 = vmatpush.msra.mxu0 0.0
        %259 = vmatpush.msra.mxu0 0.0
        %260 = vmatpush.msra.mxu0 0.0
        %261 = vmatpush.msra.mxu0 0.0
        %262 = vmatpush.msra.mxu0 %v237
        %263 = vmatpush.msra.mxu0 %v235
        %264 = vmatmul.f32.gmra.mxu0 %v246
        %v265 = vpop.f32.mrf.mxu0
        %v266 = vadd.f32 %v242, %v265
        %267 = vdwg.mxu0
        %268 = vmatpush.msra.mxu0 0.0
        %269 = vmatpush.msra.mxu0 0.0
        %270 = vmatpush.msra.mxu0 0.0
        %271 = vmatpush.msra.mxu0 0.0
        %272 = vmatpush.msra.mxu0 0.0
        %273 = vmatpush.msra.mxu0 0.0
        %274 = vmatpush.msra.mxu0 0.0
        %275 = vmatpush.msra.mxu0 0.0
        %276 = vmatpush.msra.mxu0 0.0
        %277 = vmatpush.msra.mxu0 0.0
        %278 = vmatpush.msra.mxu0 0.0
        %279 = vmatpush.msra.mxu0 0.0
        %280 = vmatpush.msra.mxu0 0.0
        %281 = vmatpush.msra.mxu0 0.0
        %282 = vmatpush.msra.mxu0 %v238
        %283 = vmatpush.msra.mxu0 %v236
        %284 = vmatmul.f32.gmra.mxu0 %v246
        %v285 = vpop.f32.mrf.mxu0
        %v286 = vadd.f32 %v242, %v285
        %287 = vdwg.mxu0
        %v288 = vmax.f32 %v266, 0.0
        %v289 = vmax.f32 %v286, 0.0
        %290 = vmatpush.msra.mxu0 %v218
        %291 = vmatpush.msra.mxu0 %v217
        %292 = vmatpush.msra.mxu0 %v216
        %293 = vmatpush.msra.mxu0 %v215
        %294 = vmatpush.msra.mxu0 %v214
        %295 = vmatpush.msra.mxu0 %v213
        %296 = vmatpush.msra.mxu0 %v212
        %297 = vmatpush.msra.mxu0 %v211
        %298 = vmatpush.msra.mxu0 %v210
        %299 = vmatpush.msra.mxu0 %v209
        %300 = vmatpush.msra.mxu0 %v208
        %301 = vmatpush.msra.mxu0 %v207
        %302 = vmatpush.msra.mxu0 %v206
        %303 = vmatpush.msra.mxu0 %v205
        %304 = vmatpush.msra.mxu0 %v204
        %305 = vmatpush.msra.mxu0 %v203
        %306 = vmatmul.f32.gmra.mxu0 %v288
        %v307 = vpop.f32.mrf.mxu0
        %v308 = vadd.f32 0.0, %v307
        %309 = vdwg.mxu0
        %310 = vmatpush.msra.mxu0 %v234
        %311 = vmatpush.msra.mxu0 %v233
        %312 = vmatpush.msra.mxu0 %v232
        %313 = vmatpush.msra.mxu0 %v231
        %314 = vmatpush.msra.mxu0 %v230
        %315 = vmatpush.msra.mxu0 %v229
        %316 = vmatpush.msra.mxu0 %v228
        %317 = vmatpush.msra.mxu0 %v227
        %318 = vmatpush.msra.mxu0 %v226
        %319 = vmatpush.msra.mxu0 %v225
        %320 = vmatpush.msra.mxu0 %v224
        %321 = vmatpush.msra.mxu0 %v223
        %322 = vmatpush.msra.mxu0 %v222
        %323 = vmatpush.msra.mxu0 %v221
        %324 = vmatpush.msra.mxu0 %v220
        %325 = vmatpush.msra.mxu0 %v219
        %326 = vmatmul.f32.gmra.mxu0 %v289
        %v327 = vpop.f32.mrf.mxu0
        %v328 = vadd.f32 %v308, %v327
        %329 = vdwg.mxu0
        %s330 = scalar_lea.vmem %s199, 32
        %v331 = vld [vmem:[%s330] sm:$0xff]
        %v332 = vld [vmem:[%s330 + $0x8] sm:$0xff]
        %v333 = vld [vmem:[%s330 + $0x10] sm:$0xff]
        %v334 = vld [vmem:[%s330 + $0x18] sm:$0xff]
        %335 = vmatpush.msra.mxu0 0.0
        %336 = vmatpush.msra.mxu0 0.0
        %337 = vmatpush.msra.mxu0 0.0
        %338 = vmatpush.msra.mxu0 0.0
        %339 = vmatpush.msra.mxu0 0.0
        %340 = vmatpush.msra.mxu0 0.0
        %341 = vmatpush.msra.mxu0 0.0
        %342 = vmatpush.msra.mxu0 0.0
        %343 = vmatpush.msra.mxu0 0.0
        %344 = vmatpush.msra.mxu0 0.0
        %345 = vmatpush.msra.mxu0 0.0
        %346 = vmatpush.msra.mxu0 0.0
        %347 = vmatpush.msra.mxu0 0.0
        %348 = vmatpush.msra.mxu0 0.0
        %349 = vmatpush.msra.mxu0 %v333
        %350 = vmatpush.msra.mxu0 %v331
        %351 = vmatmul.f32.gmra.mxu0 %v246
        %v352 = vpop.f32.mrf.mxu0
        %v353 = vadd.f32 %v242, %v352
        %354 = vdwg.mxu0
        %355 = vmatpush.msra.mxu0 0.0
        %356 = vmatpush.msra.mxu0 0.0
        %357 = vmatpush.msra.mxu0 0.0
        %358 = vmatpush.msra.mxu0 0.0
        %359 = vmatpush.msra.mxu0 0.0
        %360 = vmatpush.msra.mxu0 0.0
        %361 = vmatpush.msra.mxu0 0.0
        %362 = vmatpush.msra.mxu0 0.0
        %363 = vmatpush.msra.mxu0 0.0
        %364 = vmatpush.msra.mxu0 0.0
        %365 = vmatpush.msra.mxu0 0.0
        %366 = vmatpush.msra.mxu0 0.0
        %367 = vmatpush.msra.mxu0 0.0
        %368 = vmatpush.msra.mxu0 0.0
        %369 = vmatpush.msra.mxu0 %v334
        %370 = vmatpush.msra.mxu0 %v332
        %371 = vmatmul.f32.gmra.mxu0 %v246
        %v372 = vpop.f32.mrf.mxu0
        %v373 = vadd.f32 %v242, %v372
        %374 = vdwg.mxu0
        %v375 = vmax.f32 %v353, 0.0
        %v376 = vmax.f32 %v373, 0.0
        %377 = vmatpush.msra.mxu0 %v218
        %378 = vmatpush.msra.mxu0 %v217
        %379 = vmatpush.msra.mxu0 %v216
        %380 = vmatpush.msra.mxu0 %v215
        %381 = vmatpush.msra.mxu0 %v214
        %382 = vmatpush.msra.mxu0 %v213
        %383 = vmatpush.msra.mxu0 %v212
        %384 = vmatpush.msra.mxu0 %v211
        %385 = vmatpush.msra.mxu0 %v210
        %386 = vmatpush.msra.mxu0 %v209
        %387 = vmatpush.msra.mxu0 %v208
        %388 = vmatpush.msra.mxu0 %v207
        %389 = vmatpush.msra.mxu0 %v206
        %390 = vmatpush.msra.mxu0 %v205
        %391 = vmatpush.msra.mxu0 %v204
        %392 = vmatpush.msra.mxu0 %v203
        %393 = vmatmul.f32.gmra.mxu0 %v375
        %v394 = vpop.f32.mrf.mxu0
        %v395 = vadd.f32 0.0, %v394
        %396 = vdwg.mxu0
        %397 = vmatpush.msra.mxu0 %v234
        %398 = vmatpush.msra.mxu0 %v233
        %399 = vmatpush.msra.mxu0 %v232
        %400 = vmatpush.msra.mxu0 %v231
        %401 = vmatpush.msra.mxu0 %v230
        %402 = vmatpush.msra.mxu0 %v229
        %403 = vmatpush.msra.mxu0 %v228
        %404 = vmatpush.msra.mxu0 %v227
        %405 = vmatpush.msra.mxu0 %v226
        %406 = vmatpush.msra.mxu0 %v225
        %407 = vmatpush.msra.mxu0 %v224
        %408 = vmatpush.msra.mxu0 %v223
        %409 = vmatpush.msra.mxu0 %v222
        %410 = vmatpush.msra.mxu0 %v221
        %411 = vmatpush.msra.mxu0 %v220
        %412 = vmatpush.msra.mxu0 %v219
        %413 = vmatmul.f32.gmra.mxu0 %v376
        %v414 = vpop.f32.mrf.mxu0
        %v415 = vadd.f32 %v395, %v414
        %416 = vdwg.mxu0
        %418 = vrot.lane.b32.xlu0 %v415, 64
        %v419 = vpop.permute.xlu0 %418
        %vm421 = vcmask 523264
        %v422 = vsel %vm421, %v328, %v419
        %423 = vst [vmem:[%s193] sm:$0xff] %v422
        %s424 = sand.u32 %s115, 1
        %s425 = scalar_lea.sflag [#allocation3], %s424
        %s426 = sand.u32 %s115, 1
        %s427 = smul.addr %s426, 8
        %s428 = scalar_lea.vmem [#allocation2], %s427
        // Predicated region
        $region37: #{tpu_custom_call.1} parent=35 // pred_check
          %p429 = pneg %p125
        $region38: #{tpu_custom_call.1} parent=35 // pred_check_branch
          %431 = sbr.rel (%p429) target = $region40
        $region39: #{tpu_custom_call.1} parent=35 // pred_region
          %433 = vsyncadd %s425, 0
          %s434 = smul.addr %s18, 8
          %s435 = scalar_lea.hbm %s4, %s434
          %s437 = sshll.u32 %s428, 4
          %s438 = int_to_ptr.vmem [resolvable:$true] %s437
          %s439 = sshll.u32 %s435, 4
          %s440 = int_to_ptr.hbm [resolvable:$true] %s439
          %442 = dma.vmem_to_hbm [thread:$0]  %s438, 128, %s440, %s425
        $region40: #{tpu_custom_call.1} parent=35 // pred_fallthru
          _
      $region36: #{tpu_custom_call.1} parent=5 // pred_fallthru
        _
      %p443 = scmp.le.s32.totalorder 2, %s13
      // Predicated region
      $region41: #{tpu_custom_call.1} parent=5 // pred_check
        %p444 = pneg %p443
      $region42: #{tpu_custom_call.1} parent=5 // pred_check_branch
        %446 = sbr.rel (%p444) target = $region44
      $region43: #{tpu_custom_call.1} parent=5 // pred_region
        %s447 = ssub.s32 %s13, 2
        // Predicated region
        $region45: #{tpu_custom_call.1} parent=43 // pred_check
          %p448 = pneg %p131
        $region46: #{tpu_custom_call.1} parent=43 // pred_check_branch
          %450 = sbr.rel (%p448) target = $region48
        $region47: #{tpu_custom_call.1} parent=43 // pred_region
          %s451 = sand.u32 %s116, 1
          %s452 = scalar_lea.sflag [#allocation3], %s451
          %s453 = sand.u32 %s116, 1
          %s454 = smul.addr %s453, 8
          %s455 = scalar_lea.vmem [#allocation2], %s454
          %457 = dma.done %s452, 128
        $region48: #{tpu_custom_call.1} parent=43 // pred_fallthru
          _
      $region44: #{tpu_custom_call.1} parent=5 // pred_fallthru
        _
    $region6: #{tpu_custom_call.1} parent=1 // loop_footer
      %s17 = sadd.s32 1, %s13
    $region7: #{tpu_custom_call.1} parent=1 // loop_footer_branch
      %12 = sbr.rel target = $region3
    $region8: #{tpu_custom_call.1} parent=1 // loop_exit
      _
    %458 = vsyncpa [#allocation3], 1
    %s459 = scalar_lea.sflag [#allocation3], 1
    %460 = vsyncpa %s459, 1

</llo_original>
